<compile_context>
chip_gen: v7x
topology: tpu7x:2x2x1
jax: 0.10.0
libtpu: 0.0.40
codegen_flags: <defaults>
</compile_context>

<pallas_src>
import functools

import jax
import jax.numpy as jnp
from jax.experimental import pallas as pl
from jax.experimental.pallas import tpu as pltpu

_LANE = 128


def _sublane(itemsize):
    # Sublane tile: 8 for 4-byte, 16 for 2-byte, 32 for 1-byte dtypes.
    return max(8, 32 // itemsize)


def _identity_min(dtype):
    # Identity element for max (used only to mask ragged spatial tiles).
    if jnp.issubdtype(dtype, jnp.floating):
        return float("-inf")
    return int(jnp.iinfo(dtype).min)


# ---------------------------------------------------------------------------
# Kernels
# ---------------------------------------------------------------------------
def _gmp_kernel_single(x_ref, o_ref, *, hw, chunk_fold):
    """One spatial block per output tile: reduce the whole block in one shot.

    For large blocks, fold 128-lane chunks elementwise (VPU) to bound the live
    vreg set, then finish with a single cross-lane (XLU) max.
    """
    if chunk_fold:
        nfull = hw // _LANE

        def body(i, acc):
            off = pl.multiple_of(i * _LANE, _LANE)
            return jnp.maximum(acc, x_ref[:, :, pl.ds(off, _LANE)])

        part = jax.lax.fori_loop(1, nfull, body, x_ref[:, :, 0:_LANE],
                                 unroll=(nfull <= 8))
        res = jnp.max(part, axis=2)
        rem = hw - nfull * _LANE
        if rem:
            res = jnp.maximum(res, jnp.max(x_ref[:, :, nfull * _LANE:hw], axis=2))
        o_ref[...] = res
    else:
        o_ref[...] = jnp.max(x_ref[...], axis=2)


def _gmp_kernel_split(x_ref, o_ref, acc_ref, *, thw, hw, min_val):
    """HW split across grid axis 2 (deferred-reduce P3 pattern).

    Per step: elementwise-fold the block's 128-lane chunks into a lane-wide
    [tn, tc, 128] VMEM accumulator (VPU only, no per-step XLU reduce and no
    narrow per-step output store).  The cross-lane reduce and the o_ref store
    happen only on the last reduction step.  Ragged last spatial tiles are
    masked to the max-identity value.
    """
    h = pl.program_id(2)
    nchunks = thw // _LANE                 # thw is always a multiple of 128
    need_mask = (hw % thw) != 0            # static Python bool

    def fold(i, acc):
        off = pl.multiple_of(i * _LANE, _LANE)
        chunk = x_ref[:, :, pl.ds(off, _LANE)]
        if need_mask:
            lane_idx = jax.lax.broadcasted_iota(jnp.int32, chunk.shape, 2)
            in_bounds = (lane_idx + (h * thw + off)) < hw
            chunk = jnp.where(in_bounds, chunk, jnp.full_like(chunk, min_val))
        return jnp.maximum(acc, chunk)

    init = jnp.full(acc_ref.shape, min_val, dtype=acc_ref.dtype)
    part = jax.lax.fori_loop(0, nchunks, fold, init, unroll=(nchunks <= 8))

    @pl.when(h == 0)
    def _():
        acc_ref[...] = part                                  # init accumulator

    @pl.when(h > 0)
    def _():
        acc_ref[...] = jnp.maximum(acc_ref[...], part)       # lane-wide RMW

    @pl.when(h == pl.num_programs(2) - 1)
    def _():
        o_ref[...] = jnp.max(acc_ref[...], axis=2)           # single XLU reduce


# ---------------------------------------------------------------------------
# Tile selection
# ---------------------------------------------------------------------------
def _choose_tiles(n, c, hw, itemsize, target_bytes):
    sub = _sublane(itemsize)
    tc_min = c if c <= _LANE else _LANE
    tn_min = n if n <= sub else sub

    if tn_min * tc_min * hw * itemsize <= target_bytes:
        # Full spatial extent per block: contiguous tc*HW runs per sample.
        thw = hw
        if c <= _LANE:
            tc = c
        else:
            groups = max(1, target_bytes // (tn_min * _LANE * hw * itemsize))
            tc = c if groups * _LANE >= c else groups * _LANE
        rows = target_bytes // (tc * hw * itemsize)
        if rows >= n:
            tn = n
        else:
            tn = max(sub, (rows // sub) * sub)   # sublane-aligned, < n here
    else:
        # Even the minimal legal (tn, tc) block with full HW blows the budget:
        # split HW with the largest lane-aligned tile that fits (VMEM guard).
        tn, tc = tn_min, tc_min
        thw = max(_LANE, (target_bytes // (tn * tc * itemsize)) // _LANE * _LANE)
    return tn, tc, thw


def _split_for_megacore(n, c, tn, tc, total_bytes, itemsize):
    """If batch+channel collapsed to a single (parallel) block on a non-trivial
    input, split C (preferred) or N so a 2-TensorCore chip gets >=2 blocks."""
    if tn != n or tc != c or total_bytes < (1 << 20):
        return tn, tc
    sub = _sublane(itemsize)
    if c > _LANE:
        half = -(-c // 2)
        tc = -(-half // _LANE) * _LANE       # multiple of 128, yields 2 blocks
    elif n > sub:
        half = -(-n // 2)
        tn = -(-half // sub) * sub           # multiple of sublane tile
    return tn, tc


def _vmem_capacity_bytes(default=64 << 20):
    try:
        info = pltpu.get_tpu_info()
        return int(getattr(info, "vmem_capacity_bytes", default))
    except Exception:
        return default


# ---------------------------------------------------------------------------
# Wrapper
# ---------------------------------------------------------------------------
def fast_global_max_pooling(x, *, target_block_bytes=None, vmem_limit_bytes=None):
    """Equivalent of torch.amax(x, dim=(2, 3)) for NCHW `x`."""
    n, c, h_, w_ = x.shape
    hw = h_ * w_
    x3 = x.reshape(n, c, hw)                       # contiguous reshape, no copy
    itemsize = x3.dtype.itemsize

    if target_block_bytes is None:
        # 8 MiB blocks on 64-MiB-VMEM chips (v7x); 16 MiB on v5e/v6e.
        big_vmem = _vmem_capacity_bytes() > (64 << 20)
        target_block_bytes = (16 << 20) if big_vmem else (8 << 20)

    tn, tc, thw = _choose_tiles(n, c, hw, itemsize, target_block_bytes)
    tn, tc = _split_for_megacore(n, c, tn, tc, n * c * hw * itemsize, itemsize)

    gn, gc, gh = pl.cdiv(n, tn), pl.cdiv(c, tc), pl.cdiv(hw, thw)

    if vmem_limit_bytes is None:
        # 2x double-buffered input blocks + output blocks + accumulator + slack.
        need = (2 * tn * tc * thw + 2 * tn * tc + tn * tc * _LANE) * itemsize
        vmem_limit_bytes = min(max(32 << 20, need + (4 << 20)), 96 << 20)

    out_shape = jax.ShapeDtypeStruct((n, c), x.dtype)

    if gh == 1:
        # Single spatial block per output tile: one-shot reduce, 2-D grid.
        kernel = functools.partial(_gmp_kernel_single, hw=hw,
                                   chunk_fold=(hw >= 1024))
        return pl.pallas_call(
            kernel,
            out_shape=out_shape,
            grid=(gn, gc),
            in_specs=[pl.BlockSpec((tn, tc, hw), lambda i, j: (i, j, 0))],
            out_specs=pl.BlockSpec((tn, tc), lambda i, j: (i, j)),
            compiler_params=pltpu.CompilerParams(
                dimension_semantics=("parallel", "parallel"),
                vmem_limit_bytes=vmem_limit_bytes),
        )(x3)

    # HW split: reduction axis last, output block resident across it.
    kernel = functools.partial(_gmp_kernel_split, thw=thw, hw=hw,
                               min_val=_identity_min(x.dtype))
    return pl.pallas_call(
        kernel,
        out_shape=out_shape,
        grid=(gn, gc, gh),
        in_specs=[pl.BlockSpec((tn, tc, thw), lambda i, j, k: (i, j, k))],
        out_specs=pl.BlockSpec((tn, tc), lambda i, j, k: (i, j)),
        scratch_shapes=[pltpu.VMEM((tn, tc, _LANE), x.dtype)],
        compiler_params=pltpu.CompilerParams(
            dimension_semantics=("parallel", "parallel", "arbitrary"),
            vmem_limit_bytes=vmem_limit_bytes),
    )(x3)


if __name__ == "__main__":
    key = jax.random.PRNGKey(0)
    x = jax.random.normal(key, (2, 4, 16, 16), jnp.float32)        # NCHW

    out = fast_global_max_pooling(x)
    jax.block_until_ready(out)
    assert out.shape == (2, 4) and out.dtype == jnp.float32
    # Max-pool is exact selection arithmetic: must match the reference exactly.
    assert bool(jnp.all(out == jnp.max(x, axis=(2, 3)))), "mismatch (main path)"

    # Exercise the remaining code paths at small shapes.
    k1, k2, k3 = jax.random.split(key, 3)
    # Chunk-folded single-block path (large HW, single spatial block).
    xa = jax.random.normal(k1, (2, 4, 32, 32), jnp.float32)
    assert bool(jnp.all(fast_global_max_pooling(xa) == jnp.max(xa, axis=(2, 3))))
    # HW-split (multi-step reduction) path, exact tile divisor.
    xb = jax.random.normal(k2, (2, 4, 16, 24), jnp.float32)
    assert bool(jnp.all(fast_global_max_pooling(xb, target_block_bytes=4096)
                        == jnp.max(xb, axis=(2, 3))))
    # HW-split path with a ragged (masked) last spatial tile.
    xc = jax.random.normal(k3, (2, 4, 16, 25), jnp.float32)
    assert bool(jnp.all(fast_global_max_pooling(xc, target_block_bytes=4096)
                        == jnp.max(xc, axis=(2, 3))))

    print("KERNEL_OK")
</pallas_src>

<mosaic_0001>
module attributes {stable_mosaic.version = 11 : i64} {
  func.func @_gmp_kernel_single(%arg0: i32, %arg1: i32, %arg2: memref<2x4x256xf32, #tpu.memory_space<vmem>>, %arg3: memref<2x4xf32, #tpu.memory_space<vmem>>) attributes {dimension_semantics = [#tpu.dimension_semantics<parallel>, #tpu.dimension_semantics<parallel>], iteration_bounds = array<i64: 1, 1>, scalar_prefetch = 0 : i64, scratch_operands = 0 : i64, tpu.core_type = #tpu.core_type<tc>, window_params = [{transform_indices = @transform_0, window_bounds = array<i64: 2, 4, 256>}, {transform_indices = @transform_1, window_bounds = array<i64: 2, 4>}]} {
    %c0 = arith.constant 0 : index
    %c0_0 = arith.constant 0 : index
    %c0_1 = arith.constant 0 : index
    %0 = vector.load %arg2[%c0, %c0_0, %c0_1] : memref<2x4x256xf32, #tpu.memory_space<vmem>>, vector<2x4x256xf32>
    %cst = arith.constant dense<0xFF800000> : vector<2x4xf32>
    %1 = vector.multi_reduction <maximumf>, %0, %cst [2] : vector<2x4x256xf32> to vector<2x4xf32>
    %c0_2 = arith.constant 0 : index
    %c0_3 = arith.constant 0 : index
    %2 = vector.load %arg3[%c0_2, %c0_3] : memref<2x4xf32, #tpu.memory_space<vmem>>, vector<2x4xf32>
    tpu.vector_store %arg3[%c0_2, %c0_3], %1 {strides = array<i32>} : memref<2x4xf32, #tpu.memory_space<vmem>>, vector<2x4xf32>,
    return
  }
  func.func @transform_0(%arg0: i32, %arg1: i32) -> (i32, i32, i32) {
    %c0_i32 = arith.constant 0 : i32
    %c0_i32_0 = arith.constant 0 : i32
    return %arg0, %arg1, %c0_i32 : i32, i32, i32
  }
  func.func @transform_1(%arg0: i32, %arg1: i32) -> (i32, i32) {
    %c0_i32 = arith.constant 0 : i32
    return %arg0, %arg1 : i32, i32
  }
}

</mosaic_0001>

<llo_original>
// kernel: tpu_custom_call.1
$region0: #{tpu_custom_call.1}
  #allocation0 [shape = 'u32[]', space=smem, size = 0x4, offset = 0x4, fixed_abs, tag = 'smem constant byte address 0x4 - core index']
  #allocation1 [shape = 'u32[144,128]{1,0:T(1,128)}', space=vmem, size = 0x12000, scoped, tag = 'internal scratch']
  %s0 = inlined_call_operand.hbm [shape: f32[2,4,256], index: 0, kind: input, shape index: {}]
  %s1 = inlined_call_operand.hbm [shape: f32[2,4], index: 1, kind: output, shape index: {}]
  %s2 = sld [smem:[#allocation0]]
  $region18: #{tpu_custom_call.1} parent=0
    _
  %s4 = ssub.s32 1, %s2
  %s5 = scalar_select 0, %s4, %s2
  $region1: #{tpu_custom_call.1} parent=0
    #allocation2 [shape = 'u8[8192]{0}', space=vmem, size = 0x2000, scoped, tag = 'input window, operand 0, single buffered']
    #allocation3 [shape = 's32[1]{0}', space=sflag, size = 0x4, scoped, tag = 'scoped memory for tpu_custom_call.1']
    #allocation4 [shape = 's32[1]{0}', space=sflag, size = 0x4, scoped, tag = 'scoped memory for tpu_custom_call.1']
    #allocation5 [shape = 'u8[1024]{0}', space=vmem, size = 0x400, scoped, tag = 'output window, operand 0, single buffered']
    %6 = vsyncpa [#allocation3], 0
    %7 = vsyncpa [#allocation4], 0
    // Predicated region
    $region2: #{tpu_custom_call.1} parent=1 // pred_check
      _
    $region3: #{tpu_custom_call.1} parent=1 // pred_check_branch
      %9 = sbr.rel (0) target = $region5
    $region4: #{tpu_custom_call.1} parent=1 // pred_region
      %s11 = ssub.s32 256, 256
      %12 = vsyncadd [#allocation3], %s11
      %s13 = sshll.u32 [#allocation2], 4
      %s14 = int_to_ptr.vmem [resolvable:$true] %s13
      %19 = dma.hbm_to_vmem [thread:$0]  %s0, 256, %s14, [#allocation3], 128, 128, 8
    $region5: #{tpu_custom_call.1} parent=1 // pred_fallthru
      _
    // Predicated region
    $region6: #{tpu_custom_call.1} parent=1 // pred_check
      _
    $region7: #{tpu_custom_call.1} parent=1 // pred_check_branch
      %21 = sbr.rel (0) target = $region9
    $region8: #{tpu_custom_call.1} parent=1 // pred_region
      %22 = dma.done [#allocation3], 256
    $region9: #{tpu_custom_call.1} parent=1 // pred_fallthru
      _
    %v23 = vld [vmem:[#allocation2] sm:$0xff]
    %v24 = vld [vmem:[#allocation2 + $0x8] sm:$0xff]
    %v27 = vcombine.high %v23, %v23
    %v28 = vcombine.high %v24, %v24
    %vm31 = vcmask 1043456
    %v32 = vsel %vm31, %v23, -inf
    %v33 = vsel %vm31, %v27, -inf
    %v34 = vmax.f32 %v32, %v33
    %35 = vmax.xlane.f32.xlu0 %v34
    %v36 = vpop.xlane.xlu0 %35
    %v37 = vsel %vm31, %v24, -inf
    %v38 = vsel %vm31, %v28, -inf
    %v39 = vmax.f32 %v37, %v38
    %40 = vmax.xlane.f32.xlu0 %v39
    %v41 = vpop.xlane.xlu0 %40
    %v44 = vlaneseq
    %v45 = vand.u32 %v44, 127
    %v46 = vlaneseq
    %v47 = vshrl.u32 %v46, 7
    %v48 = vsub.s32 %v45, %v47
    %v49 = vrot.slane %v36, %v48
    %v50 = vlaneseq
    %v51 = vshrl.u32 %v50, 7
    %v52 = vsub.s32 %v45, %v51
    %v53 = vrot.slane %v41, %v52
    %vm54 = vcmask 1041409
    %v55 = vsel %vm54, %v53, %v49
    %vm57 = vcmask 25600
    %58 = vst.msk [vmem:[#allocation5] sm:$0x3] %vm57, %v55
    // Predicated region
    $region10: #{tpu_custom_call.1} parent=1 // pred_check
      _
    $region11: #{tpu_custom_call.1} parent=1 // pred_check_branch
      %60 = sbr.rel (0) target = $region13
    $region12: #{tpu_custom_call.1} parent=1 // pred_region
      %s62 = ssub.s32 32, 32
      %63 = vsyncadd [#allocation4], %s62
      %s65 = sshll.u32 [#allocation5], 4
      %s66 = int_to_ptr.vmem [resolvable:$true] %s65
      %68 = dma.vmem_to_hbm [thread:$0]  %s66, 32, %s1, [#allocation4]
    $region13: #{tpu_custom_call.1} parent=1 // pred_fallthru
      _
    // Predicated region
    $region14: #{tpu_custom_call.1} parent=1 // pred_check
      _
    $region15: #{tpu_custom_call.1} parent=1 // pred_check_branch
      %70 = sbr.rel (0) target = $region17
    $region16: #{tpu_custom_call.1} parent=1 // pred_region
      %71 = dma.done [#allocation4], 32
    $region17: #{tpu_custom_call.1} parent=1 // pred_fallthru
      _
    %72 = vsyncpa [#allocation3], 1
    %73 = vsyncpa [#allocation4], 1

</llo_original>
